<compile_context>
chip_gen: v5e
topology: v5e:2x2
jax: 0.10.0
libtpu: 0.0.40
codegen_flags: <defaults>
</compile_context>

<pallas_src>
import functools

import jax
import jax.numpy as jnp
import numpy as np
from jax.experimental import pallas as pl
from jax.experimental.pallas import tpu as pltpu

LANE = 128
_VMEM_LIMIT = 32 * 1024 * 1024  # explicit scoped-VMEM budget (safe on v5e/v6e/v7x)


def _round_up(x, m):
    return (x + m - 1) // m * m


# ----------------------------- Pallas kernels -----------------------------

def _dense_kernel(x_ref, w_ref, b_ref, o_ref, *, activation):
    y = (jnp.dot(x_ref[...], w_ref[...], preferred_element_type=jnp.float32)
         + b_ref[...])
    if activation == "sigmoid":
        y = jax.nn.sigmoid(y)
    o_ref[...] = y.astype(o_ref.dtype)


def dense(x, w, b, activation="none"):
    """x: (M, K), w: (K, N), b: (1, N) -> (M, N); whole arrays in VMEM.

    Used only for the hoisted (all-timesteps) LSTM input projections, where
    M = T*B rows feed the MXU in a single large matmul.
    """
    M, _ = x.shape
    N = w.shape[1]
    return pl.pallas_call(
        functools.partial(_dense_kernel, activation=activation),
        out_shape=jax.ShapeDtypeStruct((M, N), jnp.float32),
        compiler_params=pltpu.CompilerParams(vmem_limit_bytes=_VMEM_LIMIT),
    )(x, w, b)


def _lstm_gates(pre, c, H):
    """PyTorch gate order i, f, g, o on a (B, 4H) pre-activation."""
    i = jax.nn.sigmoid(pre[:, 0:H])
    f = jax.nn.sigmoid(pre[:, H:2 * H])
    g = jnp.tanh(pre[:, 2 * H:3 * H])
    o = jax.nn.sigmoid(pre[:, 3 * H:4 * H])
    c_new = f * c + i * g
    h_new = o * jnp.tanh(c_new)
    return h_new, c_new


def _lstm_encoder_kernel(xp_ref, whh_ref, hout_ref):
    """Full-sequence encoder LSTM; emits only the final hidden state.

    xp_ref : (T, B, 4H)  precomputed x @ W_ih + (b_ih + b_hh), time-major
    whh_ref: (H, 4H)
    hout   : (B, H)      h_T
    """
    T, B, G4 = xp_ref.shape
    H = G4 // 4

    def step(t, carry):
        h, c = carry
        pre = xp_ref[t] + jnp.dot(h, whh_ref[...],
                                  preferred_element_type=jnp.float32)
        return _lstm_gates(pre, c, H)

    h0 = jnp.zeros((B, H), jnp.float32)
    c0 = jnp.zeros((B, H), jnp.float32)
    # Small static trip count -> fully unroll for LLO scheduling visibility.
    h_last, _ = jax.lax.fori_loop(0, T, step, (h0, c0), unroll=True)
    hout_ref[...] = h_last


def lstm_encoder_final(xp_tm, w_hh_t):
    T, B, G4 = xp_tm.shape
    H = G4 // 4
    return pl.pallas_call(
        _lstm_encoder_kernel,
        out_shape=jax.ShapeDtypeStruct((B, H), jnp.float32),
        compiler_params=pltpu.CompilerParams(vmem_limit_bytes=_VMEM_LIMIT),
    )(xp_tm, w_hh_t)


def _lstm_decoder_logits_kernel(xp_ref, whh_ref, h0_ref, c0_ref,
                                wv_ref, bv_ref, out_ref):
    """Decoder LSTM fused with the vocab projection.

    xp_ref : (Tm1, B, 4H)   precomputed x @ W_ih + bias (last step already dropped)
    whh_ref: (H, 4H)
    wv_ref : (H, Vp)        vocab head, Vp padded to a multiple of 128 lanes
    bv_ref : (1, Vp)
    out    : (Tm1, B, Vp)   lane-dense logits, time-major
    """
    Tm1, B, G4 = xp_ref.shape
    H = G4 // 4

    def step(t, carry):
        h, c = carry
        pre = xp_ref[t] + jnp.dot(h, whh_ref[...],
                                  preferred_element_type=jnp.float32)
        h, c = _lstm_gates(pre, c, H)
        logits_t = (jnp.dot(h, wv_ref[...], preferred_element_type=jnp.float32)
                    + bv_ref[...])
        out_ref[t] = logits_t.astype(out_ref.dtype)
        return h, c

    jax.lax.fori_loop(0, Tm1, step, (h0_ref[...], c0_ref[...]), unroll=True)


def lstm_decoder_logits(xp_tm, w_hh_t, h0, c0, w_vocab_p, b_vocab_p):
    Tm1, B, _ = xp_tm.shape
    Vp = w_vocab_p.shape[1]
    return pl.pallas_call(
        _lstm_decoder_logits_kernel,
        out_shape=jax.ShapeDtypeStruct((Tm1, B, Vp), jnp.float32),
        compiler_params=pltpu.CompilerParams(vmem_limit_bytes=_VMEM_LIMIT),
    )(xp_tm, w_hh_t, h0, c0, w_vocab_p, b_vocab_p)


def _encoder_head_kernel(*refs, n_e2o, deterministic):
    """Fused: encoder2out sigmoid MLP -> mu/logvar -> reparam -> latent2dec h0/c0."""
    idx = 0
    h_ref = refs[idx]; idx += 1
    e2o = []
    for _ in range(n_e2o):
        e2o.append((refs[idx], refs[idx + 1]))
        idx += 2
    w_mu, b_mu, w_lv, b_lv = refs[idx:idx + 4]; idx += 4
    w_l2h, b_l2h, w_l2c, b_l2c = refs[idx:idx + 4]; idx += 4
    eps_ref = refs[idx]; idx += 1
    mu_out, lv_out, h0_out, c0_out = refs[idx:idx + 4]

    out = h_ref[...]
    for w, b in e2o:
        out = jax.nn.sigmoid(
            jnp.dot(out, w[...], preferred_element_type=jnp.float32) + b[...])
    mu = jnp.dot(out, w_mu[...], preferred_element_type=jnp.float32) + b_mu[...]
    lv = jnp.dot(out, w_lv[...], preferred_element_type=jnp.float32) + b_lv[...]
    if deterministic:
        z = mu
    else:
        z = mu + jnp.exp(0.5 * lv) * eps_ref[...]
    h0 = jnp.dot(z, w_l2h[...], preferred_element_type=jnp.float32) + b_l2h[...]
    c0 = jnp.dot(z, w_l2c[...], preferred_element_type=jnp.float32) + b_l2c[...]
    mu_out[...] = mu
    lv_out[...] = lv
    h0_out[...] = h0
    c0_out[...] = c0


def encoder_head(h_enc, e2o, w_mu, b_mu, w_lv, b_lv,
                 w_l2h, b_l2h, w_l2c, b_l2c, eps, deterministic):
    B = h_enc.shape[0]
    L = w_mu.shape[1]
    Hd = w_l2h.shape[1]
    flat = []
    for w, b in e2o:
        flat += [w, b]
    return pl.pallas_call(
        functools.partial(_encoder_head_kernel, n_e2o=len(e2o),
                          deterministic=deterministic),
        out_shape=(jax.ShapeDtypeStruct((B, L), jnp.float32),
                   jax.ShapeDtypeStruct((B, L), jnp.float32),
                   jax.ShapeDtypeStruct((B, Hd), jnp.float32),
                   jax.ShapeDtypeStruct((B, Hd), jnp.float32)),
        compiler_params=pltpu.CompilerParams(vmem_limit_bytes=_VMEM_LIMIT),
    )(h_enc, *flat, w_mu, b_mu, w_lv, b_lv, w_l2h, b_l2h, w_l2c, b_l2c, eps)


# ----------------------------- parameters ---------------------------------

def init_params(key, *, vocab_size, emb_dim, enc_hidden, dec_hidden,
                latent_dim, enc2out_dims, pad_idx):
    ks = iter(jax.random.split(key, 32))

    def nrm(shape, scale=0.1):
        return scale * jax.random.normal(next(ks), shape, dtype=jnp.float32)

    params = {}
    emb = nrm((vocab_size, emb_dim), 0.5)
    params["embedding"] = emb.at[pad_idx].set(0.0)      # padding_idx row = 0

    # encoder LSTM (1 layer); weights pre-transposed, b_ih+b_hh merged
    params["enc_w_ih_t"] = nrm((emb_dim, 4 * enc_hidden))
    params["enc_w_hh_t"] = nrm((enc_hidden, 4 * enc_hidden))
    params["enc_b"] = nrm((1, 4 * enc_hidden))

    # encoder2out: Linear + Sigmoid per entry
    e2o = []
    in_dim = enc_hidden
    for d in enc2out_dims:
        e2o.append((nrm((in_dim, d)), nrm((1, d))))
        in_dim = d
    params["encoder2out"] = e2o

    params["w_mu"] = nrm((in_dim, latent_dim))
    params["b_mu"] = nrm((1, latent_dim))
    params["w_lv"] = nrm((in_dim, latent_dim))
    params["b_lv"] = nrm((1, latent_dim))

    params["w_l2h"] = nrm((latent_dim, dec_hidden))     # num_layers = 1
    params["b_l2h"] = nrm((1, dec_hidden))
    params["w_l2c"] = nrm((latent_dim, dec_hidden))
    params["b_l2c"] = nrm((1, dec_hidden))

    # decoder LSTM (1 layer)
    params["dec_w_ih_t"] = nrm((emb_dim, 4 * dec_hidden))
    params["dec_w_hh_t"] = nrm((dec_hidden, 4 * dec_hidden))
    params["dec_b"] = nrm((1, 4 * dec_hidden))

    params["w_vocab"] = nrm((dec_hidden, vocab_size))
    params["b_vocab"] = nrm((1, vocab_size))
    return params


# ----------------------------- forward pass (Pallas) ------------------------

def smiles_vae_forward(params, in_seq, out_seq, eps, deterministic=False):
    B, T_in = in_seq.shape
    T_out = out_seq.shape[1]
    emb = params["embedding"]
    enc_H = params["enc_w_hh_t"].shape[0]
    dec_H = params["dec_w_hh_t"].shape[0]
    V = params["w_vocab"].shape[1]
    Vp = _round_up(V, LANE)
    E = emb.shape[1]

    # ---- encode ----
    x = jnp.take(emb, in_seq, axis=0)                    # (B, T, E) gather (glue)
    x_tm = jnp.transpose(x, (1, 0, 2))                   # (T, B, E) time-major
    # Hoisted input projection: one big MXU matmul over all T*B rows.
    xp = dense(x_tm.reshape(T_in * B, E), params["enc_w_ih_t"], params["enc_b"])
    xp = xp.reshape(T_in, B, 4 * enc_H)
    h_last = lstm_encoder_final(xp, params["enc_w_hh_t"])  # (B, H_enc)

    # ---- fused encoder head: MLP -> mu/logvar -> reparam -> h0/c0 ----
    mu, logvar, h0d, c0d = encoder_head(
        h_last, params["encoder2out"], params["w_mu"], params["b_mu"],
        params["w_lv"], params["b_lv"], params["w_l2h"], params["b_l2h"],
        params["w_l2c"], params["b_l2c"], eps, deterministic)

    # ---- decode (teacher forcing); last timestep's logits are dropped, so
    #      skip that LSTM step and its projection entirely ----
    y = jnp.take(emb, out_seq[:, :T_out - 1], axis=0)    # (B, T-1, E)
    y_tm = jnp.transpose(y, (1, 0, 2))                   # (T-1, B, E)
    yp = dense(y_tm.reshape((T_out - 1) * B, E),
               params["dec_w_ih_t"], params["dec_b"])
    yp = yp.reshape(T_out - 1, B, 4 * dec_H)

    # lane-dense vocab head (pad V up to a multiple of 128 lanes)
    wv = jnp.pad(params["w_vocab"], ((0, 0), (0, Vp - V)))
    bv = jnp.pad(params["b_vocab"], ((0, 0), (0, Vp - V)))
    logits_tm = lstm_decoder_logits(yp, params["dec_w_hh_t"], h0d, c0d, wv, bv)
    logits = jnp.transpose(logits_tm, (1, 0, 2))[:, :, :V]   # (B, T-1, V)
    return logits, mu, logvar


# ----------------------- pure-JAX reference (sanity) ------------------------

def _ref_dense(x, w, b, activation="none"):
    y = jnp.dot(x, w, precision=jax.lax.Precision.HIGHEST) + b
    if activation == "sigmoid":
        y = jax.nn.sigmoid(y)
    return y


def _ref_lstm(x_tm, wih_t, whh_t, b, h0, c0):
    H = h0.shape[-1]

    def step(carry, x_t):
        h, c = carry
        gates = (jnp.dot(x_t, wih_t, precision=jax.lax.Precision.HIGHEST)
                 + jnp.dot(h, whh_t, precision=jax.lax.Precision.HIGHEST) + b)
        i = jax.nn.sigmoid(gates[:, :H])
        f = jax.nn.sigmoid(gates[:, H:2 * H])
        g = jnp.tanh(gates[:, 2 * H:3 * H])
        o = jax.nn.sigmoid(gates[:, 3 * H:])
        c = f * c + i * g
        h = o * jnp.tanh(c)
        return (h, c), h

    _, hs = jax.lax.scan(step, (h0, c0), x_tm)
    return hs


def smiles_vae_forward_ref(params, in_seq, out_seq, eps, deterministic=False):
    B, _ = in_seq.shape
    emb = params["embedding"]
    enc_H = params["enc_w_hh_t"].shape[0]
    dec_H = params["dec_w_hh_t"].shape[0]

    x_tm = jnp.transpose(jnp.take(emb, in_seq, axis=0), (1, 0, 2))
    h0 = jnp.zeros((B, enc_H), jnp.float32)
    c0 = jnp.zeros((B, enc_H), jnp.float32)
    enc_hs = _ref_lstm(x_tm, params["enc_w_ih_t"], params["enc_w_hh_t"],
                       params["enc_b"], h0, c0)
    out = enc_hs[-1]
    for w, b in params["encoder2out"]:
        out = _ref_dense(out, w, b, "sigmoid")
    mu = _ref_dense(out, params["w_mu"], params["b_mu"])
    logvar = _ref_dense(out, params["w_lv"], params["b_lv"])
    z = mu if deterministic else mu + jnp.exp(0.5 * logvar) * eps

    h0d = _ref_dense(z, params["w_l2h"], params["b_l2h"])
    c0d = _ref_dense(z, params["w_l2c"], params["b_l2c"])
    y_tm = jnp.transpose(jnp.take(emb, out_seq, axis=0), (1, 0, 2))
    dec_hs = _ref_lstm(y_tm, params["dec_w_ih_t"], params["dec_w_hh_t"],
                       params["dec_b"], h0d, c0d)        # (T, B, H_dec)
    T_out = out_seq.shape[1]
    dec_flat = jnp.transpose(dec_hs, (1, 0, 2)).reshape(B * T_out, dec_H)
    logits = _ref_dense(dec_flat, params["w_vocab"], params["b_vocab"])
    logits = logits.reshape(B, T_out, -1)
    return logits[:, :-1], mu, logvar


# --------------------------------- main -------------------------------------

if __name__ == "__main__":
    # Shapes follow the torch defaults (emb=128, hidden=128, enc2out=[128,128]);
    # hidden/emb are multiples of 128 so gate slices are lane-aligned.
    B, T = 2, 8
    vocab_size = 40            # padded to 128 lanes inside the fused vocab head
    emb_dim = 128
    enc_hidden = dec_hidden = 128
    latent_dim = 16
    pad_idx = 0

    key = jax.random.PRNGKey(0)
    pkey, k_in, k_out, k_eps = jax.random.split(key, 4)
    params = init_params(pkey, vocab_size=vocab_size, emb_dim=emb_dim,
                         enc_hidden=enc_hidden, dec_hidden=dec_hidden,
                         latent_dim=latent_dim, enc2out_dims=[128, 128],
                         pad_idx=pad_idx)

    in_seq = jax.random.randint(k_in, (B, T), 0, vocab_size, dtype=jnp.int32)
    out_seq = jax.random.randint(k_out, (B, T), 0, vocab_size, dtype=jnp.int32)
    eps = jax.random.normal(k_eps, (B, latent_dim), dtype=jnp.float32)

    logits, mu, logvar = smiles_vae_forward(params, in_seq, out_seq, eps,
                                            deterministic=False)
    jax.block_until_ready((logits, mu, logvar))

    # numeric sanity check vs. pure-JAX reference (tolerance bounded by default
    # MXU f32 precision, i.e. bf16 passes, not by the kernel restructuring)
    r_logits, r_mu, r_lv = smiles_vae_forward_ref(params, in_seq, out_seq, eps,
                                                  deterministic=False)
    np.testing.assert_allclose(np.asarray(logits), np.asarray(r_logits),
                               rtol=2e-2, atol=2e-2)
    np.testing.assert_allclose(np.asarray(mu), np.asarray(r_mu),
                               rtol=2e-2, atol=2e-2)
    np.testing.assert_allclose(np.asarray(logvar), np.asarray(r_lv),
                               rtol=2e-2, atol=2e-2)

    assert logits.shape == (B, T - 1, vocab_size)
    assert mu.shape == (B, latent_dim) and logvar.shape == (B, latent_dim)
    print("KERNEL_OK")
</pallas_src>

<mosaic_0001>
module attributes {stable_mosaic.version = 11 : i64} {
  func.func @_dense_kernel(%arg0: memref<16x128xf32, #tpu.memory_space<vmem>>, %arg1: memref<128x512xf32, #tpu.memory_space<vmem>>, %arg2: memref<1x512xf32, #tpu.memory_space<vmem>>, %arg3: memref<16x512xf32, #tpu.memory_space<vmem>>) attributes {dimension_semantics = [], scalar_prefetch = 0 : i64, scratch_operands = 0 : i64, tpu.core_type = #tpu.core_type<tc>} {
    %c0 = arith.constant 0 : index
    %c0_0 = arith.constant 0 : index
    %0 = vector.load %arg0[%c0, %c0_0] : memref<16x128xf32, #tpu.memory_space<vmem>>, vector<16x128xf32>
    %c0_1 = arith.constant 0 : index
    %c0_2 = arith.constant 0 : index
    %1 = vector.load %arg1[%c0_1, %c0_2] : memref<128x512xf32, #tpu.memory_space<vmem>>, vector<128x512xf32>
    %cst = arith.constant dense<0.000000e+00> : vector<16x512xf32>
    %2 = tpu.matmul %0, %1, %cst {dimension_numbers = #tpu.dot_dimension_numbers<[1], [0], [0], [1], [0, 0, 1, 1], [], []>} : vector<16x128xf32>, vector<128x512xf32>, vector<16x512xf32> -> vector<16x512xf32>
    %c0_3 = arith.constant 0 : index
    %c0_4 = arith.constant 0 : index
    %3 = vector.load %arg2[%c0_3, %c0_4] : memref<1x512xf32, #tpu.memory_space<vmem>>, vector<1x512xf32>
    %4 = vector.broadcast %3 : vector<1x512xf32> to vector<16x512xf32>
    %5 = arith.addf %2, %4 : vector<16x512xf32>
    %c0_5 = arith.constant 0 : index
    %c0_6 = arith.constant 0 : index
    %6 = vector.load %arg3[%c0_5, %c0_6] : memref<16x512xf32, #tpu.memory_space<vmem>>, vector<16x512xf32>
    tpu.vector_store %arg3[%c0_5, %c0_6], %5 {strides = array<i32>} : memref<16x512xf32, #tpu.memory_space<vmem>>, vector<16x512xf32>,
    return
  }
}

</mosaic_0001>

<llo_original>
// kernel: tpu_custom_call.1
$region0: #{tpu_custom_call.1}
  #allocation0 [shape = 'u32[]', space=smem, size = 0x4, offset = 0x4, fixed_abs, tag = 'smem constant byte address 0x4 - core index']
  #allocation1 [shape = 'u32[72,128]{1,0:T(1,128)}', space=vmem, size = 0x9000, scoped, tag = 'internal scratch']
  %s0 = inlined_call_operand.hbm [shape: f32[16,128], index: 0, kind: input, shape index: {}]
  %s1 = inlined_call_operand.hbm [shape: f32[128,512], index: 1, kind: input, shape index: {}]
  %s2 = inlined_call_operand.hbm [shape: f32[1,512], index: 2, kind: input, shape index: {}]
  %s3 = inlined_call_operand.hbm [shape: f32[16,512], index: 3, kind: output, shape index: {}]
  %s4 = sld [smem:[#allocation0]]
  $region34: #{tpu_custom_call.1} parent=0
    _
  %s6 = ssub.s32 1, %s4
  %s7 = scalar_select 0, %s6, %s4
  $region1: #{tpu_custom_call.1} parent=0
    #allocation2 [shape = 'u8[8192]{0}', space=vmem, size = 0x2000, scoped, tag = 'input window, operand 0, single buffered']
    #allocation3 [shape = 's32[1]{0}', space=sflag, size = 0x4, scoped, tag = 'scoped memory for tpu_custom_call.1']
    #allocation4 [shape = 's32[1]{0}', space=sflag, size = 0x4, scoped, tag = 'scoped memory for tpu_custom_call.1']
    #allocation5 [shape = 'u8[262144]{0}', space=vmem, size = 0x40000, scoped, tag = 'input window, operand 1, single buffered']
    #allocation6 [shape = 's32[1]{0}', space=sflag, size = 0x4, scoped, tag = 'scoped memory for tpu_custom_call.1']
    #allocation7 [shape = 'u8[2048]{0}', space=vmem, size = 0x800, scoped, tag = 'input window, operand 2, single buffered']
    #allocation8 [shape = 'u8[32768]{0}', space=vmem, size = 0x8000, scoped, tag = 'output window, operand 0, single buffered']
    %8 = vsyncpa [#allocation3], 0
    %9 = vsyncpa [#allocation6], 0
    %10 = vsyncpa [#allocation4], 0
    // Predicated region
    $region2: #{tpu_custom_call.1} parent=1 // pred_check
      _
    $region3: #{tpu_custom_call.1} parent=1 // pred_check_branch
      %12 = sbr.rel (0) target = $region5
    $region4: #{tpu_custom_call.1} parent=1 // pred_region
      %14 = vsyncadd [#allocation3], 0
      %s15 = sshll.u32 %s0, 4
      %s16 = int_to_ptr.hbm [resolvable:$true] %s15
      %s17 = sshll.u32 [#allocation2], 4
      %s18 = int_to_ptr.vmem [resolvable:$true] %s17
      %23 = dma.hbm_to_vmem [thread:$0]  %s16, 256, %s18, [#allocation3], 128, 128, 8
    $region5: #{tpu_custom_call.1} parent=1 // pred_fallthru
      _
    // Predicated region
    $region6: #{tpu_custom_call.1} parent=1 // pred_check
      _
    $region7: #{tpu_custom_call.1} parent=1 // pred_check_branch
      %25 = sbr.rel (0) target = $region9
    $region8: #{tpu_custom_call.1} parent=1 // pred_region
      %27 = vsyncadd [#allocation6], 0
      %s28 = sshll.u32 %s1, 4
      %s29 = int_to_ptr.hbm [resolvable:$true] %s28
      %s30 = sshll.u32 [#allocation5], 4
      %s31 = int_to_ptr.vmem [resolvable:$true] %s30
      %36 = dma.hbm_to_vmem [thread:$0]  %s29, 8192, %s31, [#allocation6], 512, 512, 32
    $region9: #{tpu_custom_call.1} parent=1 // pred_fallthru
      _
    // Predicated region
    $region10: #{tpu_custom_call.1} parent=1 // pred_check
      _
    $region11: #{tpu_custom_call.1} parent=1 // pred_check_branch
      %38 = sbr.rel (0) target = $region13
    $region12: #{tpu_custom_call.1} parent=1 // pred_region
      %40 = vsyncadd [#allocation6], 0
      %s42 = sshll.u32 %s2, 4
      %s43 = int_to_ptr.hbm [resolvable:$true] %s42
      %s44 = sshll.u32 [#allocation7], 4
      %s45 = int_to_ptr.vmem [resolvable:$true] %s44
      %47 = dma.hbm_to_vmem [thread:$0]  %s43, 64, %s45, [#allocation6]
    $region13: #{tpu_custom_call.1} parent=1 // pred_fallthru
      _
    // Predicated region
    $region14: #{tpu_custom_call.1} parent=1 // pred_check
      _
    $region15: #{tpu_custom_call.1} parent=1 // pred_check_branch
      %49 = sbr.rel (0) target = $region17
    $region16: #{tpu_custom_call.1} parent=1 // pred_region
      %51 = dma.done [#allocation3], 256
    $region17: #{tpu_custom_call.1} parent=1 // pred_fallthru
      _
    // Predicated region
    $region18: #{tpu_custom_call.1} parent=1 // pred_check
      _
    $region19: #{tpu_custom_call.1} parent=1 // pred_check_branch
      %53 = sbr.rel (0) target = $region21
    $region20: #{tpu_custom_call.1} parent=1 // pred_region
      %55 = dma.done [#allocation6], 8192
    $region21: #{tpu_custom_call.1} parent=1 // pred_fallthru
      _
    // Predicated region
    $region22: #{tpu_custom_call.1} parent=1 // pred_check
      _
    $region23: #{tpu_custom_call.1} parent=1 // pred_check_branch
      %57 = sbr.rel (0) target = $region25
    $region24: #{tpu_custom_call.1} parent=1 // pred_region
      %59 = dma.done [#allocation6], 64
    $region25: #{tpu_custom_call.1} parent=1 // pred_fallthru
      _
    %v60 = vld [vmem:[#allocation2] sm:$0xff]
    %v61 = vld [vmem:[#allocation2 + $0x8] sm:$0xff]
    %v62 = vld [vmem:[#allocation5] sm:$0xff]
    %v63 = vld [vmem:[#allocation5 + $0x8] sm:$0xff]
    %v64 = vld [vmem:[#allocation5 + $0x10] sm:$0xff]
    %v65 = vld [vmem:[#allocation5 + $0x18] sm:$0xff]
    %v66 = vld [vmem:[#allocation5 + $0x20] sm:$0xff]
    %v67 = vld [vmem:[#allocation5 + $0x28] sm:$0xff]
    %v68 = vld [vmem:[#allocation5 + $0x30] sm:$0xff]
    %v69 = vld [vmem:[#allocation5 + $0x38] sm:$0xff]
    %v70 = vld [vmem:[#allocation5 + $0x40] sm:$0xff]
    %v71 = vld [vmem:[#allocation5 + $0x48] sm:$0xff]
    %v72 = vld [vmem:[#allocation5 + $0x50] sm:$0xff]
    %v73 = vld [vmem:[#allocation5 + $0x58] sm:$0xff]
    %v74 = vld [vmem:[#allocation5 + $0x60] sm:$0xff]
    %v75 = vld [vmem:[#allocation5 + $0x68] sm:$0xff]
    %v76 = vld [vmem:[#allocation5 + $0x70] sm:$0xff]
    %v77 = vld [vmem:[#allocation5 + $0x78] sm:$0xff]
    %v78 = vld [vmem:[#allocation5 + $0x80] sm:$0xff]
    %v79 = vld [vmem:[#allocation5 + $0x88] sm:$0xff]
    %v80 = vld [vmem:[#allocation5 + $0x90] sm:$0xff]
    %v81 = vld [vmem:[#allocation5 + $0x98] sm:$0xff]
    %v82 = vld [vmem:[#allocation5 + $0xa0] sm:$0xff]
    %v83 = vld [vmem:[#allocation5 + $0xa8] sm:$0xff]
    %v84 = vld [vmem:[#allocation5 + $0xb0] sm:$0xff]
    %v85 = vld [vmem:[#allocation5 + $0xb8] sm:$0xff]
    %v86 = vld [vmem:[#allocation5 + $0xc0] sm:$0xff]
    %v87 = vld [vmem:[#allocation5 + $0xc8] sm:$0xff]
    %v88 = vld [vmem:[#allocation5 + $0xd0] sm:$0xff]
    %v89 = vld [vmem:[#allocation5 + $0xd8] sm:$0xff]
    %v90 = vld [vmem:[#allocation5 + $0xe0] sm:$0xff]
    %v91 = vld [vmem:[#allocation5 + $0xe8] sm:$0xff]
    %v92 = vld [vmem:[#allocation5 + $0xf0] sm:$0xff]
    %v93 = vld [vmem:[#allocation5 + $0xf8] sm:$0xff]
    %v94 = vld [vmem:[#allocation5 + $0x100] sm:$0xff]
    %v95 = vld [vmem:[#allocation5 + $0x108] sm:$0xff]
    %v96 = vld [vmem:[#allocation5 + $0x110] sm:$0xff]
    %v97 = vld [vmem:[#allocation5 + $0x118] sm:$0xff]
    %v98 = vld [vmem:[#allocation5 + $0x120] sm:$0xff]
    %v99 = vld [vmem:[#allocation5 + $0x128] sm:$0xff]
    %v100 = vld [vmem:[#allocation5 + $0x130] sm:$0xff]
    %v101 = vld [vmem:[#allocation5 + $0x138] sm:$0xff]
    %v102 = vld [vmem:[#allocation5 + $0x140] sm:$0xff]
    %v103 = vld [vmem:[#allocation5 + $0x148] sm:$0xff]
    %v104 = vld [vmem:[#allocation5 + $0x150] sm:$0xff]
    %v105 = vld [vmem:[#allocation5 + $0x158] sm:$0xff]
    %v106 = vld [vmem:[#allocation5 + $0x160] sm:$0xff]
    %v107 = vld [vmem:[#allocation5 + $0x168] sm:$0xff]
    %v108 = vld [vmem:[#allocation5 + $0x170] sm:$0xff]
    %v109 = vld [vmem:[#allocation5 + $0x178] sm:$0xff]
    %v110 = vld [vmem:[#allocation5 + $0x180] sm:$0xff]
    %v111 = vld [vmem:[#allocation5 + $0x188] sm:$0xff]
    %v112 = vld [vmem:[#allocation5 + $0x190] sm:$0xff]
    %v113 = vld [vmem:[#allocation5 + $0x198] sm:$0xff]
    %v114 = vld [vmem:[#allocation5 + $0x1a0] sm:$0xff]
    %v115 = vld [vmem:[#allocation5 + $0x1a8] sm:$0xff]
    %v116 = vld [vmem:[#allocation5 + $0x1b0] sm:$0xff]
    %v117 = vld [vmem:[#allocation5 + $0x1b8] sm:$0xff]
    %v118 = vld [vmem:[#allocation5 + $0x1c0] sm:$0xff]
    %v119 = vld [vmem:[#allocation5 + $0x1c8] sm:$0xff]
    %v120 = vld [vmem:[#allocation5 + $0x1d0] sm:$0xff]
    %v121 = vld [vmem:[#allocation5 + $0x1d8] sm:$0xff]
    %v122 = vld [vmem:[#allocation5 + $0x1e0] sm:$0xff]
    %v123 = vld [vmem:[#allocation5 + $0x1e8] sm:$0xff]
    %v124 = vld [vmem:[#allocation5 + $0x1f0] sm:$0xff]
    %v125 = vld [vmem:[#allocation5 + $0x1f8] sm:$0xff]
    %v126 = vld [vmem:[#allocation7] sm:$0xf]
    %v128 = vperm.slane %v126, 0
    %v129 = vperm.slane %v126, 1
    %v130 = vperm.slane %v126, 2
    %v131 = vperm.slane %v126, 3
    %136 = vmatpush.msra.mxu0 %v122
    %137 = vmatpush.msra.mxu0 %v118
    %138 = vmatpush.msra.mxu0 %v114
    %139 = vmatpush.msra.mxu0 %v110
    %140 = vmatpush.msra.mxu0 %v106
    %141 = vmatpush.msra.mxu0 %v102
    %142 = vmatpush.msra.mxu0 %v98
    %143 = vmatpush.msra.mxu0 %v94
    %144 = vmatpush.msra.mxu0 %v90
    %145 = vmatpush.msra.mxu0 %v86
    %146 = vmatpush.msra.mxu0 %v82
    %147 = vmatpush.msra.mxu0 %v78
    %148 = vmatpush.msra.mxu0 %v74
    %149 = vmatpush.msra.mxu0 %v70
    %150 = vmatpush.msra.mxu0 %v66
    %151 = vmatpush.msra.mxu0 %v62
    %152 = vmatmul.f32.gmra.mxu0 %v60
    %v153 = vpop.f32.mrf.mxu0
    %v154 = vadd.f32 %v128, %v153
    %155 = vmatmul.f32.gmra.mxu0 %v61
    %v156 = vpop.f32.mrf.mxu0
    %v157 = vadd.f32 %v128, %v156
    %158 = vdwg.mxu0
    %159 = vmatpush.msra.mxu0 %v123
    %160 = vmatpush.msra.mxu0 %v119
    %161 = vmatpush.msra.mxu0 %v115
    %162 = vmatpush.msra.mxu0 %v111
    %163 = vmatpush.msra.mxu0 %v107
    %164 = vmatpush.msra.mxu0 %v103
    %165 = vmatpush.msra.mxu0 %v99
    %166 = vmatpush.msra.mxu0 %v95
    %167 = vmatpush.msra.mxu0 %v91
    %168 = vmatpush.msra.mxu0 %v87
    %169 = vmatpush.msra.mxu0 %v83
    %170 = vmatpush.msra.mxu0 %v79
    %171 = vmatpush.msra.mxu0 %v75
    %172 = vmatpush.msra.mxu0 %v71
    %173 = vmatpush.msra.mxu0 %v67
    %174 = vmatpush.msra.mxu0 %v63
    %175 = vmatmul.f32.gmra.mxu0 %v60
    %v176 = vpop.f32.mrf.mxu0
    %v177 = vadd.f32 %v129, %v176
    %178 = vmatmul.f32.gmra.mxu0 %v61
    %v179 = vpop.f32.mrf.mxu0
    %v180 = vadd.f32 %v129, %v179
    %181 = vdwg.mxu0
    %182 = vmatpush.msra.mxu0 %v124
    %183 = vmatpush.msra.mxu0 %v120
    %184 = vmatpush.msra.mxu0 %v116
    %185 = vmatpush.msra.mxu0 %v112
    %186 = vmatpush.msra.mxu0 %v108
    %187 = vmatpush.msra.mxu0 %v104
    %188 = vmatpush.msra.mxu0 %v100
    %189 = vmatpush.msra.mxu0 %v96
    %190 = vmatpush.msra.mxu0 %v92
    %191 = vmatpush.msra.mxu0 %v88
    %192 = vmatpush.msra.mxu0 %v84
    %193 = vmatpush.msra.mxu0 %v80
    %194 = vmatpush.msra.mxu0 %v76
    %195 = vmatpush.msra.mxu0 %v72
    %196 = vmatpush.msra.mxu0 %v68
    %197 = vmatpush.msra.mxu0 %v64
    %198 = vmatmul.f32.gmra.mxu0 %v60
    %v199 = vpop.f32.mrf.mxu0
    %v200 = vadd.f32 %v130, %v199
    %201 = vmatmul.f32.gmra.mxu0 %v61
    %v202 = vpop.f32.mrf.mxu0
    %v203 = vadd.f32 %v130, %v202
    %204 = vdwg.mxu0
    %205 = vmatpush.msra.mxu0 %v125
    %206 = vmatpush.msra.mxu0 %v121
    %207 = vmatpush.msra.mxu0 %v117
    %208 = vmatpush.msra.mxu0 %v113
    %209 = vmatpush.msra.mxu0 %v109
    %210 = vmatpush.msra.mxu0 %v105
    %211 = vmatpush.msra.mxu0 %v101
    %212 = vmatpush.msra.mxu0 %v97
    %213 = vmatpush.msra.mxu0 %v93
    %214 = vmatpush.msra.mxu0 %v89
    %215 = vmatpush.msra.mxu0 %v85
    %216 = vmatpush.msra.mxu0 %v81
    %217 = vmatpush.msra.mxu0 %v77
    %218 = vmatpush.msra.mxu0 %v73
    %219 = vmatpush.msra.mxu0 %v69
    %220 = vmatpush.msra.mxu0 %v65
    %221 = vmatmul.f32.gmra.mxu0 %v60
    %v222 = vpop.f32.mrf.mxu0
    %v223 = vadd.f32 %v131, %v222
    %224 = vmatmul.f32.gmra.mxu0 %v61
    %v225 = vpop.f32.mrf.mxu0
    %v226 = vadd.f32 %v131, %v225
    %227 = vdwg.mxu0
    %228 = vst [vmem:[#allocation8] sm:$0xff] %v154
    %229 = vst [vmem:[#allocation8 + $0x8] sm:$0xff] %v177
    %230 = vst [vmem:[#allocation8 + $0x10] sm:$0xff] %v200
    %231 = vst [vmem:[#allocation8 + $0x18] sm:$0xff] %v223
    %232 = vst [vmem:[#allocation8 + $0x20] sm:$0xff] %v157
    %233 = vst [vmem:[#allocation8 + $0x28] sm:$0xff] %v180
    %234 = vst [vmem:[#allocation8 + $0x30] sm:$0xff] %v203
    %235 = vst [vmem:[#allocation8 + $0x38] sm:$0xff] %v226
    // Predicated region
    $region26: #{tpu_custom_call.1} parent=1 // pred_check
      _
    $region27: #{tpu_custom_call.1} parent=1 // pred_check_branch
      %237 = sbr.rel (0) target = $region29
    $region28: #{tpu_custom_call.1} parent=1 // pred_region
      %239 = vsyncadd [#allocation4], 0
      %s240 = sshll.u32 [#allocation8], 4
      %s241 = int_to_ptr.vmem [resolvable:$true] %s240
      %s242 = sshll.u32 %s3, 4
      %s243 = int_to_ptr.hbm [resolvable:$true] %s242
      %248 = dma.vmem_to_hbm [thread:$0]  %s241, 1024, %s243, [#allocation4], 512, 512, 32
    $region29: #{tpu_custom_call.1} parent=1 // pred_fallthru
      _
    // Predicated region
    $region30: #{tpu_custom_call.1} parent=1 // pred_check
      _
    $region31: #{tpu_custom_call.1} parent=1 // pred_check_branch
      %250 = sbr.rel (0) target = $region33
    $region32: #{tpu_custom_call.1} parent=1 // pred_region
      %252 = dma.done [#allocation4], 1024
    $region33: #{tpu_custom_call.1} parent=1 // pred_fallthru
      _
    %253 = vsyncpa [#allocation3], 1
    %254 = vsyncpa [#allocation6], 1
    %255 = vsyncpa [#allocation4], 1

</llo_original>
